<compile_context>
chip_gen: v7x
topology: tpu7x:2x2x1
jax: 0.10.0
libtpu: 0.0.40
codegen_flags: <defaults>
</compile_context>

<pallas_src>
import jax
import jax.numpy as jnp
from jax.experimental import pallas as pl
from jax.experimental.pallas import tpu as pltpu


def _feature_processor_kernel(p_ref, wt_ref, b_ref, mt_ref, o_ref):
    """One batch element per grid step.

    p_ref  : (1, 9*Cin, H*W)   im2col patches, transposed (contraction-major), bf16
    wt_ref : (Cout, 9*Cin)     flattened conv weights, bf16
    b_ref  : (Cout, 1)         conv bias, f32
    mt_ref : (H*W, Ho*Wo)      combined bilinear interpolation matrix (transposed), bf16
    o_ref  : (1, Cout, Ho*Wo)  output block (== NCHW flattened spatially), f32
    """
    # 3x3 conv as a single im2col matmul on the MXU (f32 accumulate).
    y = jnp.dot(wt_ref[...], p_ref[0], preferred_element_type=jnp.float32)
    # bias + ReLU in f32 on the VPU.
    y = jnp.maximum(y + b_ref[...], 0.0)                       # (Cout, H*W)
    # bilinear upsample = one matmul, K = H*W fills the MXU contraction depth.
    out = jnp.dot(y.astype(mt_ref.dtype), mt_ref[...],
                  preferred_element_type=jnp.float32)           # (Cout, Ho*Wo)
    o_ref[0] = out.astype(o_ref.dtype)                          # lane-dense store (1024 lanes)


def _bilinear_matrix(in_size, out_size):
    """PyTorch nn.Upsample(mode='bilinear', align_corners=False) as a dense
    (out_size, in_size) interpolation matrix (rows sum to 1, all weights >= 0)."""
    scale = in_size / out_size
    src = (jnp.arange(out_size, dtype=jnp.float32) + 0.5) * scale - 0.5
    src = jnp.maximum(src, 0.0)                      # PyTorch clamps src >= 0
    x0 = jnp.minimum(jnp.floor(src).astype(jnp.int32), in_size - 1)
    x1 = jnp.minimum(x0 + 1, in_size - 1)
    lam = src - x0.astype(jnp.float32)
    m = ((1.0 - lam)[:, None] * jax.nn.one_hot(x0, in_size, dtype=jnp.float32)
         + lam[:, None] * jax.nn.one_hot(x1, in_size, dtype=jnp.float32))
    return m


def feature_processor(x_nchw, conv_weight, conv_bias, out_size,
                      matmul_dtype=jnp.bfloat16):
    """x_nchw: (N, Cin, H, W); conv_weight: (Cout, Cin, 3, 3); conv_bias: (Cout,).
    Returns (N, Cout, out_size, out_size), matching the PyTorch module."""
    N, Cin, H, W = x_nchw.shape
    Cout = conv_weight.shape[0]
    Ho = Wo = out_size
    HW, HoWo, K9 = H * W, Ho * Wo, Cin * 9

    # ---- wrapper-side glue -------------------------------------------------
    # im2col (transposed): patches[n, c*9 + kh*3 + kw, h*W + w] = xpad[n, c, h+kh, w+kw]
    xpad = jnp.pad(x_nchw.astype(jnp.float32), ((0, 0), (0, 0), (1, 1), (1, 1)))
    taps = [xpad[:, :, kh:kh + H, kw:kw + W] for kh in range(3) for kw in range(3)]
    patches = jnp.stack(taps, axis=2).reshape(N, K9, HW).astype(matmul_dtype)

    # flattened weights share the same contraction index order (c, kh, kw)
    wt = conv_weight.reshape(Cout, K9).astype(matmul_dtype)
    b = conv_bias.reshape(Cout, 1).astype(jnp.float32)

    # combined bilinear matrix M[(ho,wo),(h,w)] = wh[ho,h]*ww[wo,w], passed transposed
    # TODO(synk): at the module default input_size=640 this dense matrix gets large;
    # for big shapes fall back to the separable two-matmul form.
    wh = _bilinear_matrix(H, Ho)
    ww = _bilinear_matrix(W, Wo)
    mt = jnp.kron(wh, ww).T.astype(matmul_dtype)                # (H*W, Ho*Wo)

    out = pl.pallas_call(
        _feature_processor_kernel,
        out_shape=jax.ShapeDtypeStruct((N, Cout, HoWo), jnp.float32),
        grid_spec=pltpu.PrefetchScalarGridSpec(
            num_scalar_prefetch=0,
            grid=(N,),                     # for large N, tile Nb>=8 rows per step instead
            in_specs=[
                pl.BlockSpec((1, K9, HW), lambda n: (n, 0, 0)),
                pl.BlockSpec((Cout, K9), lambda n: (0, 0)),
                pl.BlockSpec((Cout, 1), lambda n: (0, 0)),
                pl.BlockSpec((HW, HoWo), lambda n: (0, 0)),
            ],
            out_specs=pl.BlockSpec((1, Cout, HoWo), lambda n: (n, 0, 0)),
        ),
        compiler_params=pltpu.CompilerParams(
            dimension_semantics=("parallel",)),   # 2x on v7x (2 TCs), no-op on v5e/v6e
    )(patches, wt, b, mt)

    # output block already has NCHW ordering; only a free reshape remains
    return out.reshape(N, Cout, Ho, Wo)


def _reference(x, w, b, out_size):
    """Pure-JAX f32 reference matching the PyTorch module."""
    y = jax.lax.conv_general_dilated(
        x.astype(jnp.float32), w.astype(jnp.float32),
        window_strides=(1, 1), padding=((1, 1), (1, 1)),
        dimension_numbers=('NCHW', 'OIHW', 'NCHW'))
    y = jnp.maximum(y + b[None, :, None, None], 0.0)
    H, W = x.shape[2], x.shape[3]
    wh = _bilinear_matrix(H, out_size)
    ww = _bilinear_matrix(W, out_size)
    return jnp.einsum('oh,pw,nchw->ncop', wh, ww, y)


if __name__ == "__main__":
    key = jax.random.PRNGKey(0)
    k_x, k_w, k_b = jax.random.split(key, 3)

    # small shapes consistent with the module: FeatureProcessor(4, 8, input_size=32)
    N, Cin, Cout, H, W, OUT = 2, 4, 8, 16, 16, 32

    x = jax.random.normal(k_x, (N, Cin, H, W), dtype=jnp.float32)
    conv_weight = jax.random.normal(k_w, (Cout, Cin, 3, 3), dtype=jnp.float32) * 0.1
    conv_bias = jax.random.normal(k_b, (Cout,), dtype=jnp.float32) * 0.1

    out = feature_processor(x, conv_weight, conv_bias, OUT)
    out = jax.block_until_ready(out)

    assert out.shape == (N, Cout, OUT, OUT), out.shape
    assert bool(jnp.all(out >= 0.0))          # convex combo of ReLU outputs stays >= 0

    ref = _reference(x, conv_weight, conv_bias, OUT)
    max_err = float(jnp.max(jnp.abs(out - ref)))
    assert max_err < 1e-1, f"max abs err vs f32 reference: {max_err}"  # bf16 matmul drift

    print("KERNEL_OK")
</pallas_src>

<mosaic_0001>
module attributes {stable_mosaic.version = 11 : i64} {
  func.func @_feature_processor_kernel(%arg0: i32, %arg1: memref<1x36x256xbf16, #tpu.memory_space<vmem>>, %arg2: memref<8x36xbf16, #tpu.memory_space<vmem>>, %arg3: memref<8x1xf32, #tpu.memory_space<vmem>>, %arg4: memref<256x1024xbf16, #tpu.memory_space<vmem>>, %arg5: memref<1x8x1024xf32, #tpu.memory_space<vmem>>) attributes {dimension_semantics = [#tpu.dimension_semantics<parallel>], iteration_bounds = array<i64: 2>, scalar_prefetch = 0 : i64, scratch_operands = 0 : i64, tpu.core_type = #tpu.core_type<tc>, window_params = [{transform_indices = @transform_0, window_bounds = array<i64: 1, 36, 256>}, {pipeline_mode = #tpu.pipeline_mode<synchronous>, transform_indices = @transform_1, window_bounds = array<i64: 8, 36>}, {pipeline_mode = #tpu.pipeline_mode<synchronous>, transform_indices = @transform_2, window_bounds = array<i64: 8, 1>}, {pipeline_mode = #tpu.pipeline_mode<synchronous>, transform_indices = @transform_3, window_bounds = array<i64: 256, 1024>}, {transform_indices = @transform_4, window_bounds = array<i64: 1, 8, 1024>}]} {
    %c0 = arith.constant 0 : index
    %c0_0 = arith.constant 0 : index
    %0 = vector.load %arg2[%c0, %c0_0] : memref<8x36xbf16, #tpu.memory_space<vmem>>, vector<8x36xbf16>
    %c0_1 = arith.constant 0 : index
    %c0_2 = arith.constant 0 : index
    %c0_3 = arith.constant 0 : index
    %1 = vector.load %arg1[%c0_1, %c0_2, %c0_3] : memref<1x36x256xbf16, #tpu.memory_space<vmem>>, vector<1x36x256xbf16>
    %2 = vector.shape_cast %1 : vector<1x36x256xbf16> to vector<36x256xbf16>
    %cst = arith.constant dense<0.000000e+00> : vector<8x256xf32>
    %3 = tpu.matmul %0, %2, %cst {dimension_numbers = #tpu.dot_dimension_numbers<[1], [0], [0], [1], [0, 0, 1, 1], [], []>} : vector<8x36xbf16>, vector<36x256xbf16>, vector<8x256xf32> -> vector<8x256xf32>
    %c0_4 = arith.constant 0 : index
    %c0_5 = arith.constant 0 : index
    %4 = vector.load %arg3[%c0_4, %c0_5] : memref<8x1xf32, #tpu.memory_space<vmem>>, vector<8x1xf32>
    %5 = vector.broadcast %4 : vector<8x1xf32> to vector<8x256xf32>
    %6 = arith.addf %3, %5 : vector<8x256xf32>
    %cst_6 = arith.constant 0.000000e+00 : f32
    %7 = vector.broadcast %cst_6 : f32 to vector<8x256xf32>
    %8 = arith.maximumf %6, %7 : vector<8x256xf32>
    %9 = arith.truncf %8 : vector<8x256xf32> to vector<8x256xbf16>
    %c0_7 = arith.constant 0 : index
    %c0_8 = arith.constant 0 : index
    %10 = vector.load %arg4[%c0_7, %c0_8] : memref<256x1024xbf16, #tpu.memory_space<vmem>>, vector<256x1024xbf16>
    %cst_9 = arith.constant dense<0.000000e+00> : vector<8x1024xf32>
    %11 = tpu.matmul %9, %10, %cst_9 {dimension_numbers = #tpu.dot_dimension_numbers<[1], [0], [0], [1], [0, 0, 1, 1], [], []>} : vector<8x256xbf16>, vector<256x1024xbf16>, vector<8x1024xf32> -> vector<8x1024xf32>
    %c0_10 = arith.constant 0 : index
    %c0_11 = arith.constant 0 : index
    %c0_12 = arith.constant 0 : index
    %12 = vector.load %arg5[%c0_10, %c0_11, %c0_12] : memref<1x8x1024xf32, #tpu.memory_space<vmem>>, vector<1x8x1024xf32>
    %13 = vector.shape_cast %12 : vector<1x8x1024xf32> to vector<8x1024xf32>
    %14 = vector.shape_cast %11 : vector<8x1024xf32> to vector<1x8x1024xf32>
    tpu.vector_store %arg5[%c0_10, %c0_11, %c0_12], %14 {strides = array<i32>} : memref<1x8x1024xf32, #tpu.memory_space<vmem>>, vector<1x8x1024xf32>,
    return
  }
  func.func @transform_0(%arg0: i32) -> (i32, i32, i32) {
    %c0_i32 = arith.constant 0 : i32
    %c0_i32_0 = arith.constant 0 : i32
    %c0_i32_1 = arith.constant 0 : i32
    return %arg0, %c0_i32, %c0_i32_0 : i32, i32, i32
  }
  func.func @transform_1(%arg0: i32) -> (i32, i32) {
    %c0_i32 = arith.constant 0 : i32
    %c0_i32_0 = arith.constant 0 : i32
    %c0_i32_1 = arith.constant 0 : i32
    return %c0_i32, %c0_i32_0 : i32, i32
  }
  func.func @transform_2(%arg0: i32) -> (i32, i32) {
    %c0_i32 = arith.constant 0 : i32
    %c0_i32_0 = arith.constant 0 : i32
    %c0_i32_1 = arith.constant 0 : i32
    return %c0_i32, %c0_i32_0 : i32, i32
  }
  func.func @transform_3(%arg0: i32) -> (i32, i32) {
    %c0_i32 = arith.constant 0 : i32
    %c0_i32_0 = arith.constant 0 : i32
    %c0_i32_1 = arith.constant 0 : i32
    return %c0_i32, %c0_i32_0 : i32, i32
  }
  func.func @transform_4(%arg0: i32) -> (i32, i32, i32) {
    %c0_i32 = arith.constant 0 : i32
    %c0_i32_0 = arith.constant 0 : i32
    %c0_i32_1 = arith.constant 0 : i32
    return %arg0, %c0_i32, %c0_i32_0 : i32, i32, i32
  }
}

</mosaic_0001>

<llo_original>
// kernel: tpu_custom_call.1
$region0: #{tpu_custom_call.1}
  #allocation0 [shape = 'u32[]', space=smem, size = 0x4, offset = 0x4, fixed_abs, tag = 'smem constant byte address 0x4 - core index']
  #allocation1 [shape = 'u32[144,128]{1,0:T(1,128)}', space=vmem, size = 0x12000, scoped, tag = 'internal scratch']
  %s0 = inlined_call_operand.vmem [shape: bf16[2,36,256], index: 0, kind: input, shape index: {}]
  %s1 = inlined_call_operand.vmem [shape: bf16[8,36], index: 1, kind: input, shape index: {}]
  %s2 = inlined_call_operand.vmem [shape: f32[8,1], index: 2, kind: input, shape index: {}]
  %s3 = inlined_call_operand.hbm [shape: bf16[256,1024], index: 3, kind: input, shape index: {}]
  %s4 = inlined_call_operand.hbm [shape: f32[2,8,1024], index: 4, kind: output, shape index: {}]
  %s5 = sld [smem:[#allocation0]]
  $region53: #{tpu_custom_call.1} parent=0
    _
  %s7 = ssub.s32 1, %s5
  %s8 = scalar_select 0, %s7, %s5
  $region1: #{tpu_custom_call.1} parent=0
    #allocation2 [shape = 'u8[524288]{0}', space=vmem, size = 0x80000, scoped, tag = 'input window, operand 3, single buffered']
    #allocation3 [shape = 's32[2]{0}', space=sflag, size = 0x8, scoped, tag = 'scoped memory for tpu_custom_call.1']
    #allocation4 [shape = 's32[2]{0}', space=sflag, size = 0x8, scoped, tag = 'scoped memory for tpu_custom_call.1']
    #allocation5 [shape = 'u8[65536]{0}', space=vmem, size = 0x10000, scoped, tag = 'output window, operand 0']
    %9 = vsyncpa [#allocation3], 0
    %10 = vsyncpa [#allocation4], 0
    %s11 = scalar_lea.sflag [#allocation4], 1
    %12 = vsyncpa %s11, 0
    loop: start=0, step=1, limit=4
    $region2: #{tpu_custom_call.1} parent=1 // loop_pre_header
      _
    $region3: #{tpu_custom_call.1} parent=1 // loop_header
      %s14 = sphi 0, %s18
      %p15 = scmp.ge.s32.totalorder %s14, 4
      %s24 = sphi 0, %s26
      %s27 = sphi 0, %s24
      %s28 = sphi 0, %s27
      %s44 = sphi 0, %s28
      %s48 = sphi 0, %s48
      %s50 = sphi 0, %s48
      %s51 = sphi 0, %s50
      %s65 = sphi 0, %s51
      %s69 = sphi 0, %s69
      %s71 = sphi 0, %s69
      %s72 = sphi 0, %s71
      %s86 = sphi 0, %s72
      %s90 = sphi 0, %s90
      %s92 = sphi 0, %s90
      %s93 = sphi 0, %s92
      %s107 = sphi 0, %s93
      %s113 = sphi 0, %s115
      %s116 = sphi 0, %s113
      %s117 = sphi 0, %s116
      %s133 = sphi 0, %s117
    $region4: #{tpu_custom_call.1} parent=1 // loop_header_branch
      %17 = sbr.rel (%p15) target = $region8
    $region5: #{tpu_custom_call.1} parent=1 // loop_body
      %s19 = ssub.s32 %s14, 1
      %s20 = ssub.s32 %s14, 2
      %s21 = sadd.s32 %s14, 1
      %s22 = ssub.s32 %s14, %s21
      %p23 = scmp.eq.s32.totalorder %s22, 0
      %s25 = sadd.s32 %s24, 1
      %s26 = scalar_select %p23, %s24, %s25
      %p29 = pneg %p23
      %p30 = scmp.eq.s32.totalorder %s14, 1
      %p31 = por %p29, %p30
      %p32 = scmp.ne.s32.totalorder %s24, %s27
      %p33 = scmp.eq.s32.totalorder %s14, 0
      %p34 = por %p32, %p33
      %p35 = scmp.ne.s32.totalorder %s24, %s27
      %p36 = scmp.eq.s32.totalorder %s19, 1
      %p37 = por %p35, %p36
      %p38 = scmp.ne.s32.totalorder %s27, %s28
      %p39 = scmp.eq.s32.totalorder %s19, 0
      %p40 = por %p38, %p39
      %p41 = scmp.ne.s32.totalorder %s27, %s28
      %p42 = scmp.eq.s32.totalorder %s20, 1
      %p43 = por %p41, %p42
      %p45 = scmp.ne.s32.totalorder %s28, %s44
      %p46 = scmp.eq.s32.totalorder %s20, 0
      %p47 = por %p45, %p46
      %s49 = sadd.s32 %s48, 1
      %p52 = scmp.eq.s32.totalorder %s14, 1
      %p53 = scmp.ne.s32.totalorder %s48, %s50
      %p54 = scmp.eq.s32.totalorder %s14, 0
      %p55 = por %p53, %p54
      %p56 = scmp.ne.s32.totalorder %s48, %s50
      %p57 = scmp.eq.s32.totalorder %s19, 1
      %p58 = por %p56, %p57
      %p59 = scmp.ne.s32.totalorder %s50, %s51
      %p60 = scmp.eq.s32.totalorder %s19, 0
      %p61 = por %p59, %p60
      %p62 = scmp.ne.s32.totalorder %s50, %s51
      %p63 = scmp.eq.s32.totalorder %s20, 1
      %p64 = por %p62, %p63
      %p66 = scmp.ne.s32.totalorder %s51, %s65
      %p67 = scmp.eq.s32.totalorder %s20, 0
      %p68 = por %p66, %p67
      %s70 = sadd.s32 %s69, 1
      %p73 = scmp.eq.s32.totalorder %s14, 1
      %p74 = scmp.ne.s32.totalorder %s69, %s71
      %p75 = scmp.eq.s32.totalorder %s14, 0
      %p76 = por %p74, %p75
      %p77 = scmp.ne.s32.totalorder %s69, %s71
      %p78 = scmp.eq.s32.totalorder %s19, 1
      %p79 = por %p77, %p78
      %p80 = scmp.ne.s32.totalorder %s71, %s72
      %p81 = scmp.eq.s32.totalorder %s19, 0
      %p82 = por %p80, %p81
      %p83 = scmp.ne.s32.totalorder %s71, %s72
      %p84 = scmp.eq.s32.totalorder %s20, 1
      %p85 = por %p83, %p84
      %p87 = scmp.ne.s32.totalorder %s72, %s86
      %p88 = scmp.eq.s32.totalorder %s20, 0
      %p89 = por %p87, %p88
      %s91 = sadd.s32 %s90, 1
      %p94 = scmp.eq.s32.totalorder %s14, 1
      %p95 = scmp.ne.s32.totalorder %s90, %s92
      %p96 = scmp.eq.s32.totalorder %s14, 0
      %p97 = por %p95, %p96
      %p98 = scmp.ne.s32.totalorder %s90, %s92
      %p99 = scmp.eq.s32.totalorder %s19, 1
      %p100 = por %p98, %p99
      %p101 = scmp.ne.s32.totalorder %s92, %s93
      %p102 = scmp.eq.s32.totalorder %s19, 0
      %p103 = por %p101, %p102
      %p104 = scmp.ne.s32.totalorder %s92, %s93
      %p105 = scmp.eq.s32.totalorder %s20, 1
      %p106 = por %p104, %p105
      %p108 = scmp.ne.s32.totalorder %s93, %s107
      %p109 = scmp.eq.s32.totalorder %s20, 0
      %p110 = por %p108, %p109
      %s111 = ssub.s32 %s14, %s21
      %p112 = scmp.eq.s32.totalorder %s111, 0
      %s114 = sadd.s32 %s113, 1
      %s115 = scalar_select %p112, %s113, %s114
      %p118 = pneg %p112
      %p119 = scmp.eq.s32.totalorder %s14, 1
      %p120 = por %p118, %p119
      %p121 = scmp.ne.s32.totalorder %s113, %s116
      %p122 = scmp.eq.s32.totalorder %s14, 0
      %p123 = por %p121, %p122
      %p124 = scmp.ne.s32.totalorder %s113, %s116
      %p125 = scmp.eq.s32.totalorder %s19, 1
      %p126 = por %p124, %p125
      %p127 = scmp.ne.s32.totalorder %s116, %s117
      %p128 = scmp.eq.s32.totalorder %s19, 0
      %p129 = por %p127, %p128
      %p130 = scmp.ne.s32.totalorder %s116, %s117
      %p131 = scmp.eq.s32.totalorder %s20, 1
      %p132 = por %p130, %p131
      %p134 = scmp.ne.s32.totalorder %s117, %s133
      %p135 = scmp.eq.s32.totalorder %s20, 0
      %p136 = por %p134, %p135
      %p137 = scmp.le.s32.totalorder 1, %s14
      %p138 = scmp.lt.s32.totalorder %s14, 3
      %p139 = pnand %p137, %p138
      %p140 = pneg %p139
      // Predicated region
      $region9: #{tpu_custom_call.1} parent=5 // pred_check
        _
      $region10: #{tpu_custom_call.1} parent=5 // pred_check_branch
        %142 = sbr.rel (%p139) target = $region12
      $region11: #{tpu_custom_call.1} parent=5 // pred_region
        %s143 = ssub.s32 %s14, 1
        // Predicated region
        $region13: #{tpu_custom_call.1} parent=11 // pred_check
          %p144 = pneg %p61
        $region14: #{tpu_custom_call.1} parent=11 // pred_check_branch
          %146 = sbr.rel (%p144) target = $region16
        $region15: #{tpu_custom_call.1} parent=11 // pred_region
          _
        $region16: #{tpu_custom_call.1} parent=11 // pred_fallthru
          _
        // Predicated region
        $region17: #{tpu_custom_call.1} parent=11 // pred_check
          %p147 = pneg %p82
        $region18: #{tpu_custom_call.1} parent=11 // pred_check_branch
          %149 = sbr.rel (%p147) target = $region20
        $region19: #{tpu_custom_call.1} parent=11 // pred_region
          _
        $region20: #{tpu_custom_call.1} parent=11 // pred_fallthru
          _
        // Predicated region
        $region21: #{tpu_custom_call.1} parent=11 // pred_check
          %p150 = pneg %p103
        $region22: #{tpu_custom_call.1} parent=11 // pred_check_branch
          %152 = sbr.rel (%p150) target = $region24
        $region23: #{tpu_custom_call.1} parent=11 // pred_region
          %s154 = ssub.s32 16384, 16384
          %155 = vsyncadd [#allocation3], %s154
          %s156 = sshll.u32 [#allocation2], 4
          %s157 = int_to_ptr.vmem [resolvable:$true] %s156
          %162 = dma.hbm_to_vmem [thread:$0]  %s3, 16384, %s157, [#allocation3], 512, 512, 32
        $region24: #{tpu_custom_call.1} parent=11 // pred_fallthru
          _
      $region12: #{tpu_custom_call.1} parent=5 // pred_fallthru
        _
      %p163 = scmp.lt.s32.totalorder %s14, 2
      // Predicated region
      $region25: #{tpu_custom_call.1} parent=5 // pred_check
        %p164 = pneg %p163
      $region26: #{tpu_custom_call.1} parent=5 // pred_check_branch
        %166 = sbr.rel (%p164) target = $region28
      $region27: #{tpu_custom_call.1} parent=5 // pred_region
        // Predicated region
        $region29: #{tpu_custom_call.1} parent=27 // pred_check
          %p167 = pneg %p34
        $region30: #{tpu_custom_call.1} parent=27 // pred_check_branch
          %169 = sbr.rel (%p167) target = $region32
        $region31: #{tpu_custom_call.1} parent=27 // pred_region
          %p170 = scmp.lt.s32.totalorder %s14, 1
          %s171 = scalar_select %p170, %s14, 1
          %s172 = smul.addr %s171, 10
          %s173 = smul.addr %s172, 4
          %s174 = scalar_lea.vmem %s0, %s173
        $region32: #{tpu_custom_call.1} parent=27 // pred_fallthru
          _
      $region28: #{tpu_custom_call.1} parent=5 // pred_fallthru
        _
      %p175 = scmp.le.s32.totalorder 1, %s14
      %p176 = scmp.lt.s32.totalorder %s14, 3
      %p177 = pnand %p175, %p176
      %p178 = pneg %p177
      // Predicated region
      $region33: #{tpu_custom_call.1} parent=5 // pred_check
        _
      $region34: #{tpu_custom_call.1} parent=5 // pred_check_branch
        %180 = sbr.rel (%p177) target = $region36
      $region35: #{tpu_custom_call.1} parent=5 // pred_region
        %s181 = ssub.s32 %s14, 1
        // Predicated region
        $region37: #{tpu_custom_call.1} parent=35 // pred_check
          %p182 = pneg %p103
        $region38: #{tpu_custom_call.1} parent=35 // pred_check_branch
          %184 = sbr.rel (%p182) target = $region40
        $region39: #{tpu_custom_call.1} parent=35 // pred_region
          %185 = dma.done [#allocation3], 16384
        $region40: #{tpu_custom_call.1} parent=35 // pred_fallthru
          _
        %p186 = scmp.lt.s32.totalorder %s19, 1
        %s187 = scalar_select %p186, %s19, 1
        %s188 = smul.addr %s187, 10
        %s189 = smul.addr %s188, 4
        %s190 = scalar_lea.vmem %s0, %s189
        %p191 = pneg %p40
        %p192 = pneg %p37
        %p193 = pneg %p61
        %p194 = pneg %p58
        %p195 = pneg %p82
        %p196 = pneg %p79
        %p197 = pneg %p103
        %p198 = pneg %p100
        %p199 = pneg %p129
        %p200 = pneg %p126
        %s201 = sand.u32 %s116, 1
        %s202 = scalar_lea.sflag [#allocation4], %s201
        %s203 = sand.u32 %s116, 1
        %s204 = smul.addr %s203, 64
        %s205 = scalar_lea.vmem [#allocation5], %s204
        %p206 = scmp.lt.s32.totalorder %s19, 1
        %s207 = scalar_select %p206, %s19, 1
        %s208 = smul.addr %s207, 10
        %s209 = smul.addr %s208, 4
        %s210 = scalar_lea.vmem %s0, %s209
        %v212 = vld [vmem:[%s1] sm:$0xf]
        %v213 = vld [vmem:[%s210] sm:$0xff]
        %v214 = vld [vmem:[%s210 + $0x8] sm:$0xff]
        %v215 = vld [vmem:[%s210 + $0x10] sm:$0xff]
        %v216 = vld [vmem:[%s210 + $0x18] sm:$0xff]
        %v217 = vld [vmem:[%s210 + $0x20] sm:$0x33]
        %v218 = vld [vmem:[%s2] sm:$0xff]
        %220 = vset.pattern.permute.xlu0 0
        %221 = vperm.xlu0 %220, %v218
        %v222 = vpop.permute.xlu0 %221
        %v229 = vunpack.c.l.b16 %v213
        %v230 = vunpack.c.h.b16 %v213
        %v231 = vunpack.c.l.b16 %v214
        %v232 = vunpack.c.h.b16 %v214
        %v233 = vunpack.c.l.b16 %v215
        %v234 = vunpack.c.h.b16 %v215
        %v235 = vunpack.c.l.b16 %v216
        %v236 = vunpack.c.h.b16 %v216
        %v237 = vunpack.c.l.b16 %v217
        %v238 = vunpack.c.h.b16 %v217
        %v239 = vpack.c.b16 %v231, %v229
        %v240 = vpack.c.b16 %v232, %v230
        %v241 = vpack.c.b16 %v235, %v233
        %v242 = vpack.c.b16 %v236, %v234
        %v243 = vpack.c.b16 %v237, %v237
        %v244 = vpack.c.b16 %v238, %v238
        %vm249 = vcmask 293888
        %v251 = vsel %vm249, %v212, 0
        %vm253 = vcmask 1041408
        %v255 = vsel %vm253, %v243, 0
        %v258 = vsel %vm253, %v244, 0
        %260 = vmatprep.subr.bf16.mxu0 %v240
        %261 = vmatpush1.bf16.msra.mxu0 %v239
        %262 = vmatprep.subr.bf16.mxu0 %v242
        %263 = vmatpush1.bf16.msra.mxu0 %v241
        %264 = vmatprep.subr.bf16.mxu0 %v258
        %265 = vmatpush1.bf16.msra.mxu0 %v255
        %266 = vmatprep.subr.bf16.mxu0 0
        %267 = vmatpush1.bf16.msra.mxu0 0
        %268 = vmatprep.subr.bf16.mxu0 0
        %269 = vmatpush1.bf16.msra.mxu0 0
        %270 = vmatprep.subr.bf16.mxu0 0
        %271 = vmatpush1.bf16.msra.mxu0 0
        %272 = vmatprep.subr.bf16.mxu0 0
        %273 = vmatpush1.bf16.msra.mxu0 0
        %274 = vmatprep.subr.bf16.mxu0 0
        %275 = vmatpush1.bf16.msra.mxu0 0
        %276 = vmatprep.subr.bf16.mxu0 0
        %277 = vmatpush1.bf16.msra.mxu0 0
        %278 = vmatprep.subr.bf16.mxu0 0
        %279 = vmatpush1.bf16.msra.mxu0 0
        %280 = vmatprep.subr.bf16.mxu0 0
        %281 = vmatpush1.bf16.msra.mxu0 0
        %282 = vmatprep.subr.bf16.mxu0 0
        %283 = vmatpush1.bf16.msra.mxu0 0
        %284 = vmatprep.subr.bf16.mxu0 0
        %285 = vmatpush1.bf16.msra.mxu0 0
        %286 = vmatprep.subr.bf16.mxu0 0
        %287 = vmatpush1.bf16.msra.mxu0 0
        %288 = vmatprep.subr.bf16.mxu0 0
        %289 = vmatpush1.bf16.msra.mxu0 0
        %290 = vmatprep.subr.bf16.mxu0 0
        %291 = vmatpush1.bf16.msra.mxu0 0
        %292 = vmatprep.mubr.bf16.mxu0 0
        %293 = vmatmul.mubr.bf16.gmra.mrb[0].mxu0 %v251
        %v294 = vpop.f32.mrb[0].mxu0
        %v295 = vadd.f32 %v222, %v294
        %v296 = vpop.f32.mrb[0].mxu0
        %v297 = vadd.f32 %v222, %v296
        %v298 = vpop.f32.mrb[0].mxu0
        %v299 = vpop.f32.mrb[0].mxu0
        %300 = vdwg.mxu0
        %v301 = vmax.f32 %v295, 0.0
        %v302 = vmax.f32 %v297, 0.0
        %v303 = vpack.c.bf16 %v301, %v301
        %v304 = vpack.c.bf16 %v302, %v302
        %v305 = vld [vmem:[#allocation2] sm:$0xff]
        %v306 = vld [vmem:[#allocation2 + $0x8] sm:$0xff]
        %v307 = vld [vmem:[#allocation2 + $0x10] sm:$0xff]
        %v308 = vld [vmem:[#allocation2 + $0x18] sm:$0xff]
        %v309 = vld [vmem:[#allocation2 + $0x20] sm:$0xff]
        %v310 = vld [vmem:[#allocation2 + $0x28] sm:$0xff]
        %v311 = vld [vmem:[#allocation2 + $0x30] sm:$0xff]
        %v312 = vld [vmem:[#allocation2 + $0x38] sm:$0xff]
        %v313 = vld [vmem:[#allocation2 + $0x40] sm:$0xff]
        %v314 = vld [vmem:[#allocation2 + $0x48] sm:$0xff]
        %v315 = vld [vmem:[#allocation2 + $0x50] sm:$0xff]
        %v316 = vld [vmem:[#allocation2 + $0x58] sm:$0xff]
        %v317 = vld [vmem:[#allocation2 + $0x60] sm:$0xff]
        %v318 = vld [vmem:[#allocation2 + $0x68] sm:$0xff]
        %v319 = vld [vmem:[#allocation2 + $0x70] sm:$0xff]
        %v320 = vld [vmem:[#allocation2 + $0x78] sm:$0xff]
        %v321 = vld [vmem:[#allocation2 + $0x80] sm:$0xff]
        %v322 = vld [vmem:[#allocation2 + $0x88] sm:$0xff]
        %v323 = vld [vmem:[#allocation2 + $0x90] sm:$0xff]
        %v324 = vld [vmem:[#allocation2 + $0x98] sm:$0xff]
        %v325 = vld [vmem:[#allocation2 + $0xa0] sm:$0xff]
        %v326 = vld [vmem:[#allocation2 + $0xa8] sm:$0xff]
        %v327 = vld [vmem:[#allocation2 + $0xb0] sm:$0xff]
        %v328 = vld [vmem:[#allocation2 + $0xb8] sm:$0xff]
        %v329 = vld [vmem:[#allocation2 + $0xc0] sm:$0xff]
        %v330 = vld [vmem:[#allocation2 + $0xc8] sm:$0xff]
        %v331 = vld [vmem:[#allocation2 + $0xd0] sm:$0xff]
        %v332 = vld [vmem:[#allocation2 + $0xd8] sm:$0xff]
        %v333 = vld [vmem:[#allocation2 + $0xe0] sm:$0xff]
        %v334 = vld [vmem:[#allocation2 + $0xe8] sm:$0xff]
        %v335 = vld [vmem:[#allocation2 + $0xf0] sm:$0xff]
        %v336 = vld [vmem:[#allocation2 + $0xf8] sm:$0xff]
        %v337 = vld [vmem:[#allocation2 + $0x100] sm:$0xff]
        %v338 = vld [vmem:[#allocation2 + $0x108] sm:$0xff]
        %v339 = vld [vmem:[#allocation2 + $0x110] sm:$0xff]
        %v340 = vld [vmem:[#allocation2 + $0x118] sm:$0xff]
        %v341 = vld [vmem:[#allocation2 + $0x120] sm:$0xff]
        %v342 = vld [vmem:[#allocation2 + $0x128] sm:$0xff]
        %v343 = vld [vmem:[#allocation2 + $0x130] sm:$0xff]
        %v344 = vld [vmem:[#allocation2 + $0x138] sm:$0xff]
        %v345 = vld [vmem:[#allocation2 + $0x140] sm:$0xff]
        %v346 = vld [vmem:[#allocation2 + $0x148] sm:$0xff]
        %v347 = vld [vmem:[#allocation2 + $0x150] sm:$0xff]
        %v348 = vld [vmem:[#allocation2 + $0x158] sm:$0xff]
        %v349 = vld [vmem:[#allocation2 + $0x160] sm:$0xff]
        %v350 = vld [vmem:[#allocation2 + $0x168] sm:$0xff]
        %v351 = vld [vmem:[#allocation2 + $0x170] sm:$0xff]
        %v352 = vld [vmem:[#allocation2 + $0x178] sm:$0xff]
        %v353 = vld [vmem:[#allocation2 + $0x180] sm:$0xff]
        %v354 = vld [vmem:[#allocation2 + $0x188] sm:$0xff]
        %v355 = vld [vmem:[#allocation2 + $0x190] sm:$0xff]
        %v356 = vld [vmem:[#allocation2 + $0x198] sm:$0xff]
        %v357 = vld [vmem:[#allocation2 + $0x1a0] sm:$0xff]
        %v358 = vld [vmem:[#allocation2 + $0x1a8] sm:$0xff]
        %v359 = vld [vmem:[#allocation2 + $0x1b0] sm:$0xff]
        %v360 = vld [vmem:[#allocation2 + $0x1b8] sm:$0xff]
        %v361 = vld [vmem:[#allocation2 + $0x1c0] sm:$0xff]
        %v362 = vld [vmem:[#allocation2 + $0x1c8] sm:$0xff]
        %v363 = vld [vmem:[#allocation2 + $0x1d0] sm:$0xff]
        %v364 = vld [vmem:[#allocation2 + $0x1d8] sm:$0xff]
        %v365 = vld [vmem:[#allocation2 + $0x1e0] sm:$0xff]
        %v366 = vld [vmem:[#allocation2 + $0x1e8] sm:$0xff]
        %v367 = vld [vmem:[#allocation2 + $0x1f0] sm:$0xff]
        %v368 = vld [vmem:[#allocation2 + $0x1f8] sm:$0xff]
        %v369 = vld [vmem:[#allocation2 + $0x200] sm:$0xff]
        %v370 = vld [vmem:[#allocation2 + $0x208] sm:$0xff]
        %v371 = vld [vmem:[#allocation2 + $0x210] sm:$0xff]
        %v372 = vld [vmem:[#allocation2 + $0x218] sm:$0xff]
        %v373 = vld [vmem:[#allocation2 + $0x220] sm:$0xff]
        %v374 = vld [vmem:[#allocation2 + $0x228] sm:$0xff]
        %v375 = vld [vmem:[#allocation2 + $0x230] sm:$0xff]
        %v376 = vld [vmem:[#allocation2 + $0x238] sm:$0xff]
        %v377 = vld [vmem:[#allocation2 + $0x240] sm:$0xff]
        %v378 = vld [vmem:[#allocation2 + $0x248] sm:$0xff]
        %v379 = vld [vmem:[#allocation2 + $0x250] sm:$0xff]
        %v380 = vld [vmem:[#allocation2 + $0x258] sm:$0xff]
        %v381 = vld [vmem:[#allocation2 + $0x260] sm:$0xff]
        %v382 = vld [vmem:[#allocation2 + $0x268] sm:$0xff]
        %v383 = vld [vmem:[#allocation2 + $0x270] sm:$0xff]
        %v384 = vld [vmem:[#allocation2 + $0x278] sm:$0xff]
        %v385 = vld [vmem:[#allocation2 + $0x280] sm:$0xff]
        %v386 = vld [vmem:[#allocation2 + $0x288] sm:$0xff]
        %v387 = vld [vmem:[#allocation2 + $0x290] sm:$0xff]
        %v388 = vld [vmem:[#allocation2 + $0x298] sm:$0xff]
        %v389 = vld [vmem:[#allocation2 + $0x2a0] sm:$0xff]
        %v390 = vld [vmem:[#allocation2 + $0x2a8] sm:$0xff]
        %v391 = vld [vmem:[#allocation2 + $0x2b0] sm:$0xff]
        %v392 = vld [vmem:[#allocation2 + $0x2b8] sm:$0xff]
        %v393 = vld [vmem:[#allocation2 + $0x2c0] sm:$0xff]
        %v394 = vld [vmem:[#allocation2 + $0x2c8] sm:$0xff]
        %v395 = vld [vmem:[#allocation2 + $0x2d0] sm:$0xff]
        %v396 = vld [vmem:[#allocation2 + $0x2d8] sm:$0xff]
        %v397 = vld [vmem:[#allocation2 + $0x2e0] sm:$0xff]
        %v398 = vld [vmem:[#allocation2 + $0x2e8] sm:$0xff]
        %v399 = vld [vmem:[#allocation2 + $0x2f0] sm:$0xff]
        %v400 = vld [vmem:[#allocation2 + $0x2f8] sm:$0xff]
        %v401 = vld [vmem:[#allocation2 + $0x300] sm:$0xff]
        %v402 = vld [vmem:[#allocation2 + $0x308] sm:$0xff]
        %v403 = vld [vmem:[#allocation2 + $0x310] sm:$0xff]
        %v404 = vld [vmem:[#allocation2 + $0x318] sm:$0xff]
        %v405 = vld [vmem:[#allocation2 + $0x320] sm:$0xff]
        %v406 = vld [vmem:[#allocation2 + $0x328] sm:$0xff]
        %v407 = vld [vmem:[#allocation2 + $0x330] sm:$0xff]
        %v408 = vld [vmem:[#allocation2 + $0x338] sm:$0xff]
        %v409 = vld [vmem:[#allocation2 + $0x340] sm:$0xff]
        %v410 = vld [vmem:[#allocation2 + $0x348] sm:$0xff]
        %v411 = vld [vmem:[#allocation2 + $0x350] sm:$0xff]
        %v412 = vld [vmem:[#allocation2 + $0x358] sm:$0xff]
        %v413 = vld [vmem:[#allocation2 + $0x360] sm:$0xff]
        %v414 = vld [vmem:[#allocation2 + $0x368] sm:$0xff]
        %v415 = vld [vmem:[#allocation2 + $0x370] sm:$0xff]
        %v416 = vld [vmem:[#allocation2 + $0x378] sm:$0xff]
        %v417 = vld [vmem:[#allocation2 + $0x380] sm:$0xff]
        %v418 = vld [vmem:[#allocation2 + $0x388] sm:$0xff]
        %v419 = vld [vmem:[#allocation2 + $0x390] sm:$0xff]
        %v420 = vld [vmem:[#allocation2 + $0x398] sm:$0xff]
        %v421 = vld [vmem:[#allocation2 + $0x3a0] sm:$0xff]
        %v422 = vld [vmem:[#allocation2 + $0x3a8] sm:$0xff]
        %v423 = vld [vmem:[#allocation2 + $0x3b0] sm:$0xff]
        %v424 = vld [vmem:[#allocation2 + $0x3b8] sm:$0xff]
        %v425 = vld [vmem:[#allocation2 + $0x3c0] sm:$0xff]
        %v426 = vld [vmem:[#allocation2 + $0x3c8] sm:$0xff]
        %v427 = vld [vmem:[#allocation2 + $0x3d0] sm:$0xff]
        %v428 = vld [vmem:[#allocation2 + $0x3d8] sm:$0xff]
        %v429 = vld [vmem:[#allocation2 + $0x3e0] sm:$0xff]
        %v430 = vld [vmem:[#allocation2 + $0x3e8] sm:$0xff]
        %v431 = vld [vmem:[#allocation2 + $0x3f0] sm:$0xff]
        %v432 = vld [vmem:[#allocation2 + $0x3f8] sm:$0xff]
        %v561 = vunpack.c.l.b16 %v305
        %v562 = vunpack.c.h.b16 %v305
        %v563 = vunpack.c.l.b16 %v306
        %v564 = vunpack.c.h.b16 %v306
        %v565 = vunpack.c.l.b16 %v307
        %v566 = vunpack.c.h.b16 %v307
        %v567 = vunpack.c.l.b16 %v308
        %v568 = vunpack.c.h.b16 %v308
        %v569 = vunpack.c.l.b16 %v309
        %v570 = vunpack.c.h.b16 %v309
        %v571 = vunpack.c.l.b16 %v310
        %v572 = vunpack.c.h.b16 %v310
        %v573 = vunpack.c.l.b16 %v311
        %v574 = vunpack.c.h.b16 %v311
        %v575 = vunpack.c.l.b16 %v312
        %v576 = vunpack.c.h.b16 %v312
        %v577 = vunpack.c.l.b16 %v313
        %v578 = vunpack.c.h.b16 %v313
        %v579 = vunpack.c.l.b16 %v314
        %v580 = vunpack.c.h.b16 %v314
        %v581 = vunpack.c.l.b16 %v315
        %v582 = vunpack.c.h.b16 %v315
        %v583 = vunpack.c.l.b16 %v316
        %v584 = vunpack.c.h.b16 %v316
        %v585 = vunpack.c.l.b16 %v317
        %v586 = vunpack.c.h.b16 %v317
        %v587 = vunpack.c.l.b16 %v318
        %v588 = vunpack.c.h.b16 %v318
        %v589 = vunpack.c.l.b16 %v319
        %v590 = vunpack.c.h.b16 %v319
        %v591 = vunpack.c.l.b16 %v320
        %v592 = vunpack.c.h.b16 %v320
        %v593 = vunpack.c.l.b16 %v321
        %v594 = vunpack.c.h.b16 %v321
        %v595 = vunpack.c.l.b16 %v322
        %v596 = vunpack.c.h.b16 %v322
        %v597 = vunpack.c.l.b16 %v323
        %v598 = vunpack.c.h.b16 %v323
        %v599 = vunpack.c.l.b16 %v324
        %v600 = vunpack.c.h.b16 %v324
        %v601 = vunpack.c.l.b16 %v325
        %v602 = vunpack.c.h.b16 %v325
        %v603 = vunpack.c.l.b16 %v326
        %v604 = vunpack.c.h.b16 %v326
        %v605 = vunpack.c.l.b16 %v327
        %v606 = vunpack.c.h.b16 %v327
        %v607 = vunpack.c.l.b16 %v328
        %v608 = vunpack.c.h.b16 %v328
        %v609 = vunpack.c.l.b16 %v329
        %v610 = vunpack.c.h.b16 %v329
        %v611 = vunpack.c.l.b16 %v330
        %v612 = vunpack.c.h.b16 %v330
        %v613 = vunpack.c.l.b16 %v331
        %v614 = vunpack.c.h.b16 %v331
        %v615 = vunpack.c.l.b16 %v332
        %v616 = vunpack.c.h.b16 %v332
        %v617 = vunpack.c.l.b16 %v333
        %v618 = vunpack.c.h.b16 %v333
        %v619 = vunpack.c.l.b16 %v334
        %v620 = vunpack.c.h.b16 %v334
        %v621 = vunpack.c.l.b16 %v335
        %v622 = vunpack.c.h.b16 %v335
        %v623 = vunpack.c.l.b16 %v336
        %v624 = vunpack.c.h.b16 %v336
        %v625 = vunpack.c.l.b16 %v337
        %v626 = vunpack.c.h.b16 %v337
        %v627 = vunpack.c.l.b16 %v338
        %v628 = vunpack.c.h.b16 %v338
        %v629 = vunpack.c.l.b16 %v339
        %v630 = vunpack.c.h.b16 %v339
        %v631 = vunpack.c.l.b16 %v340
        %v632 = vunpack.c.h.b16 %v340
        %v633 = vunpack.c.l.b16 %v341
        %v634 = vunpack.c.h.b16 %v341
        %v635 = vunpack.c.l.b16 %v342
        %v636 = vunpack.c.h.b16 %v342
        %v637 = vunpack.c.l.b16 %v343
        %v638 = vunpack.c.h.b16 %v343
        %v639 = vunpack.c.l.b16 %v344
        %v640 = vunpack.c.h.b16 %v344
        %v641 = vunpack.c.l.b16 %v345
        %v642 = vunpack.c.h.b16 %v345
        %v643 = vunpack.c.l.b16 %v346
        %v644 = vunpack.c.h.b16 %v346
        %v645 = vunpack.c.l.b16 %v347
        %v646 = vunpack.c.h.b16 %v347
        %v647 = vunpack.c.l.b16 %v348
        %v648 = vunpack.c.h.b16 %v348
        %v649 = vunpack.c.l.b16 %v349
        %v650 = vunpack.c.h.b16 %v349
        %v651 = vunpack.c.l.b16 %v350
        %v652 = vunpack.c.h.b16 %v350
        %v653 = vunpack.c.l.b16 %v351
        %v654 = vunpack.c.h.b16 %v351
        %v655 = vunpack.c.l.b16 %v352
        %v656 = vunpack.c.h.b16 %v352
        %v657 = vunpack.c.l.b16 %v353
        %v658 = vunpack.c.h.b16 %v353
        %v659 = vunpack.c.l.b16 %v354
        %v660 = vunpack.c.h.b16 %v354
        %v661 = vunpack.c.l.b16 %v355
        %v662 = vunpack.c.h.b16 %v355
        %v663 = vunpack.c.l.b16 %v356
        %v664 = vunpack.c.h.b16 %v356
        %v665 = vunpack.c.l.b16 %v357
        %v666 = vunpack.c.h.b16 %v357
        %v667 = vunpack.c.l.b16 %v358
        %v668 = vunpack.c.h.b16 %v358
        %v669 = vunpack.c.l.b16 %v359
        %v670 = vunpack.c.h.b16 %v359
        %v671 = vunpack.c.l.b16 %v360
        %v672 = vunpack.c.h.b16 %v360
        %v673 = vunpack.c.l.b16 %v361
        %v674 = vunpack.c.h.b16 %v361
        %v675 = vunpack.c.l.b16 %v362
        %v676 = vunpack.c.h.b16 %v362
        %v677 = vunpack.c.l.b16 %v363
        %v678 = vunpack.c.h.b16 %v363
        %v679 = vunpack.c.l.b16 %v364
        %v680 = vunpack.c.h.b16 %v364
        %v681 = vunpack.c.l.b16 %v365
        %v682 = vunpack.c.h.b16 %v365
        %v683 = vunpack.c.l.b16 %v366
        %v684 = vunpack.c.h.b16 %v366
        %v685 = vunpack.c.l.b16 %v367
        %v686 = vunpack.c.h.b16 %v367
        %v687 = vunpack.c.l.b16 %v368
        %v688 = vunpack.c.h.b16 %v368
        %v689 = vunpack.c.l.b16 %v369
        %v690 = vunpack.c.h.b16 %v369
        %v691 = vunpack.c.l.b16 %v370
        %v692 = vunpack.c.h.b16 %v370
        %v693 = vunpack.c.l.b16 %v371
        %v694 = vunpack.c.h.b16 %v371
        %v695 = vunpack.c.l.b16 %v372
        %v696 = vunpack.c.h.b16 %v372
        %v697 = vunpack.c.l.b16 %v373
        %v698 = vunpack.c.h.b16 %v373
        %v699 = vunpack.c.l.b16 %v374
        %v700 = vunpack.c.h.b16 %v374
        %v701 = vunpack.c.l.b16 %v375
        %v702 = vunpack.c.h.b16 %v375
        %v703 = vunpack.c.l.b16 %v376
        %v704 = vunpack.c.h.b16 %v376
        %v705 = vunpack.c.l.b16 %v377
        %v706 = vunpack.c.h.b16 %v377
        %v707 = vunpack.c.l.b16 %v378
        %v708 = vunpack.c.h.b16 %v378
        %v709 = vunpack.c.l.b16 %v379
        %v710 = vunpack.c.h.b16 %v379
        %v711 = vunpack.c.l.b16 %v380
        %v712 = vunpack.c.h.b16 %v380
        %v713 = vunpack.c.l.b16 %v381
        %v714 = vunpack.c.h.b16 %v381
        %v715 = vunpack.c.l.b16 %v382
        %v716 = vunpack.c.h.b16 %v382
        %v717 = vunpack.c.l.b16 %v383
        %v718 = vunpack.c.h.b16 %v383
        %v719 = vunpack.c.l.b16 %v384
        %v720 = vunpack.c.h.b16 %v384
        %v721 = vunpack.c.l.b16 %v385
        %v722 = vunpack.c.h.b16 %v385
        %v723 = vunpack.c.l.b16 %v386
        %v724 = vunpack.c.h.b16 %v386
        %v725 = vunpack.c.l.b16 %v387
        %v726 = vunpack.c.h.b16 %v387
        %v727 = vunpack.c.l.b16 %v388
        %v728 = vunpack.c.h.b16 %v388
        %v729 = vunpack.c.l.b16 %v389
        %v730 = vunpack.c.h.b16 %v389
        %v731 = vunpack.c.l.b16 %v390
        %v732 = vunpack.c.h.b16 %v390
        %v733 = vunpack.c.l.b16 %v391
        %v734 = vunpack.c.h.b16 %v391
        %v735 = vunpack.c.l.b16 %v392
        %v736 = vunpack.c.h.b16 %v392
        %v737 = vunpack.c.l.b16 %v393
        %v738 = vunpack.c.h.b16 %v393
        %v739 = vunpack.c.l.b16 %v394
        %v740 = vunpack.c.h.b16 %v394
        %v741 = vunpack.c.l.b16 %v395
        %v742 = vunpack.c.h.b16 %v395
        %v743 = vunpack.c.l.b16 %v396
        %v744 = vunpack.c.h.b16 %v396
        %v745 = vunpack.c.l.b16 %v397
        %v746 = vunpack.c.h.b16 %v397
        %v747 = vunpack.c.l.b16 %v398
        %v748 = vunpack.c.h.b16 %v398
        %v749 = vunpack.c.l.b16 %v399
        %v750 = vunpack.c.h.b16 %v399
        %v751 = vunpack.c.l.b16 %v400
        %v752 = vunpack.c.h.b16 %v400
        %v753 = vunpack.c.l.b16 %v401
        %v754 = vunpack.c.h.b16 %v401
        %v755 = vunpack.c.l.b16 %v402
        %v756 = vunpack.c.h.b16 %v402
        %v757 = vunpack.c.l.b16 %v403
        %v758 = vunpack.c.h.b16 %v403
        %v759 = vunpack.c.l.b16 %v404
        %v760 = vunpack.c.h.b16 %v404
        %v761 = vunpack.c.l.b16 %v405
        %v762 = vunpack.c.h.b16 %v405
        %v763 = vunpack.c.l.b16 %v406
        %v764 = vunpack.c.h.b16 %v406
        %v765 = vunpack.c.l.b16 %v407
        %v766 = vunpack.c.h.b16 %v407
        %v767 = vunpack.c.l.b16 %v408
        %v768 = vunpack.c.h.b16 %v408
        %v769 = vunpack.c.l.b16 %v409
        %v770 = vunpack.c.h.b16 %v409
        %v771 = vunpack.c.l.b16 %v410
        %v772 = vunpack.c.h.b16 %v410
        %v773 = vunpack.c.l.b16 %v411
        %v774 = vunpack.c.h.b16 %v411
        %v775 = vunpack.c.l.b16 %v412
        %v776 = vunpack.c.h.b16 %v412
        %v777 = vunpack.c.l.b16 %v413
        %v778 = vunpack.c.h.b16 %v413
        %v779 = vunpack.c.l.b16 %v414
        %v780 = vunpack.c.h.b16 %v414
        %v781 = vunpack.c.l.b16 %v415
        %v782 = vunpack.c.h.b16 %v415
        %v783 = vunpack.c.l.b16 %v416
        %v784 = vunpack.c.h.b16 %v416
        %v785 = vunpack.c.l.b16 %v417
        %v786 = vunpack.c.h.b16 %v417
        %v787 = vunpack.c.l.b16 %v418
        %v788 = vunpack.c.h.b16 %v418
        %v789 = vunpack.c.l.b16 %v419
        %v790 = vunpack.c.h.b16 %v419
        %v791 = vunpack.c.l.b16 %v420
        %v792 = vunpack.c.h.b16 %v420
        %v793 = vunpack.c.l.b16 %v421
        %v794 = vunpack.c.h.b16 %v421
        %v795 = vunpack.c.l.b16 %v422
        %v796 = vunpack.c.h.b16 %v422
        %v797 = vunpack.c.l.b16 %v423
        %v798 = vunpack.c.h.b16 %v423
        %v799 = vunpack.c.l.b16 %v424
        %v800 = vunpack.c.h.b16 %v424
        %v801 = vunpack.c.l.b16 %v425
        %v802 = vunpack.c.h.b16 %v425
        %v803 = vunpack.c.l.b16 %v426
        %v804 = vunpack.c.h.b16 %v426
        %v805 = vunpack.c.l.b16 %v427
        %v806 = vunpack.c.h.b16 %v427
        %v807 = vunpack.c.l.b16 %v428
        %v808 = vunpack.c.h.b16 %v428
        %v809 = vunpack.c.l.b16 %v429
        %v810 = vunpack.c.h.b16 %v429
        %v811 = vunpack.c.l.b16 %v430
        %v812 = vunpack.c.h.b16 %v430
        %v813 = vunpack.c.l.b16 %v431
        %v814 = vunpack.c.h.b16 %v431
        %v815 = vunpack.c.l.b16 %v432
        %v816 = vunpack.c.h.b16 %v432
        %v817 = vpack.c.b16 %v569, %v561
        %v818 = vpack.c.b16 %v570, %v562
        %v819 = vpack.c.b16 %v571, %v563
        %v820 = vpack.c.b16 %v572, %v564
        %v821 = vpack.c.b16 %v573, %v565
        %v822 = vpack.c.b16 %v574, %v566
        %v823 = vpack.c.b16 %v575, %v567
        %v824 = vpack.c.b16 %v576, %v568
        %v825 = vpack.c.b16 %v585, %v577
        %v826 = vpack.c.b16 %v586, %v578
        %v827 = vpack.c.b16 %v587, %v579
        %v828 = vpack.c.b16 %v588, %v580
        %v829 = vpack.c.b16 %v589, %v581
        %v830 = vpack.c.b16 %v590, %v582
        %v831 = vpack.c.b16 %v591, %v583
        %v832 = vpack.c.b16 %v592, %v584
        %v833 = vpack.c.b16 %v601, %v593
        %v834 = vpack.c.b16 %v602, %v594
        %v835 = vpack.c.b16 %v603, %v595
        %v836 = vpack.c.b16 %v604, %v596
        %v837 = vpack.c.b16 %v605, %v597
        %v838 = vpack.c.b16 %v606, %v598
        %v839 = vpack.c.b16 %v607, %v599
        %v840 = vpack.c.b16 %v608, %v600
        %v841 = vpack.c.b16 %v617, %v609
        %v842 = vpack.c.b16 %v618, %v610
        %v843 = vpack.c.b16 %v619, %v611
        %v844 = vpack.c.b16 %v620, %v612
        %v845 = vpack.c.b16 %v621, %v613
        %v846 = vpack.c.b16 %v622, %v614
        %v847 = vpack.c.b16 %v623, %v615
        %v848 = vpack.c.b16 %v624, %v616
        %v849 = vpack.c.b16 %v633, %v625
        %v850 = vpack.c.b16 %v634, %v626
        %v851 = vpack.c.b16 %v635, %v627
        %v852 = vpack.c.b16 %v636, %v628
        %v853 = vpack.c.b16 %v637, %v629
        %v854 = vpack.c.b16 %v638, %v630
        %v855 = vpack.c.b16 %v639, %v631
        %v856 = vpack.c.b16 %v640, %v632
        %v857 = vpack.c.b16 %v649, %v641
        %v858 = vpack.c.b16 %v650, %v642
        %v859 = vpack.c.b16 %v651, %v643
        %v860 = vpack.c.b16 %v652, %v644
        %v861 = vpack.c.b16 %v653, %v645
        %v862 = vpack.c.b16 %v654, %v646
        %v863 = vpack.c.b16 %v655, %v647
        %v864 = vpack.c.b16 %v656, %v648
        %v865 = vpack.c.b16 %v665, %v657
        %v866 = vpack.c.b16 %v666, %v658
        %v867 = vpack.c.b16 %v667, %v659
        %v868 = vpack.c.b16 %v668, %v660
        %v869 = vpack.c.b16 %v669, %v661
        %v870 = vpack.c.b16 %v670, %v662
        %v871 = vpack.c.b16 %v671, %v663
        %v872 = vpack.c.b16 %v672, %v664
        %v873 = vpack.c.b16 %v681, %v673
        %v874 = vpack.c.b16 %v682, %v674
        %v875 = vpack.c.b16 %v683, %v675
        %v876 = vpack.c.b16 %v684, %v676
        %v877 = vpack.c.b16 %v685, %v677
        %v878 = vpack.c.b16 %v686, %v678
        %v879 = vpack.c.b16 %v687, %v679
        %v880 = vpack.c.b16 %v688, %v680
        %v881 = vpack.c.b16 %v697, %v689
        %v882 = vpack.c.b16 %v698, %v690
        %v883 = vpack.c.b16 %v699, %v691
        %v884 = vpack.c.b16 %v700, %v692
        %v885 = vpack.c.b16 %v701, %v693
        %v886 = vpack.c.b16 %v702, %v694
        %v887 = vpack.c.b16 %v703, %v695
        %v888 = vpack.c.b16 %v704, %v696
        %v889 = vpack.c.b16 %v713, %v705
        %v890 = vpack.c.b16 %v714, %v706
        %v891 = vpack.c.b16 %v715, %v707
        %v892 = vpack.c.b16 %v716, %v708
        %v893 = vpack.c.b16 %v717, %v709
        %v894 = vpack.c.b16 %v718, %v710
        %v895 = vpack.c.b16 %v719, %v711
        %v896 = vpack.c.b16 %v720, %v712
        %v897 = vpack.c.b16 %v729, %v721
        %v898 = vpack.c.b16 %v730, %v722
        %v899 = vpack.c.b16 %v731, %v723
        %v900 = vpack.c.b16 %v732, %v724
        %v901 = vpack.c.b16 %v733, %v725
        %v902 = vpack.c.b16 %v734, %v726
        %v903 = vpack.c.b16 %v735, %v727
        %v904 = vpack.c.b16 %v736, %v728
        %v905 = vpack.c.b16 %v745, %v737
        %v906 = vpack.c.b16 %v746, %v738
        %v907 = vpack.c.b16 %v747, %v739
        %v908 = vpack.c.b16 %v748, %v740
        %v909 = vpack.c.b16 %v749, %v741
        %v910 = vpack.c.b16 %v750, %v742
        %v911 = vpack.c.b16 %v751, %v743
        %v912 = vpack.c.b16 %v752, %v744
        %v913 = vpack.c.b16 %v761, %v753
        %v914 = vpack.c.b16 %v762, %v754
        %v915 = vpack.c.b16 %v763, %v755
        %v916 = vpack.c.b16 %v764, %v756
        %v917 = vpack.c.b16 %v765, %v757
        %v918 = vpack.c.b16 %v766, %v758
        %v919 = vpack.c.b16 %v767, %v759
        %v920 = vpack.c.b16 %v768, %v760
        %v921 = vpack.c.b16 %v777, %v769
        %v922 = vpack.c.b16 %v778, %v770
        %v923 = vpack.c.b16 %v779, %v771
        %v924 = vpack.c.b16 %v780, %v772
        %v925 = vpack.c.b16 %v781, %v773
        %v926 = vpack.c.b16 %v782, %v774
        %v927 = vpack.c.b16 %v783, %v775
        %v928 = vpack.c.b16 %v784, %v776
        %v929 = vpack.c.b16 %v793, %v785
        %v930 = vpack.c.b16 %v794, %v786
        %v931 = vpack.c.b16 %v795, %v787
        %v932 = vpack.c.b16 %v796, %v788
        %v933 = vpack.c.b16 %v797, %v789
        %v934 = vpack.c.b16 %v798, %v790
        %v935 = vpack.c.b16 %v799, %v791
        %v936 = vpack.c.b16 %v800, %v792
        %v937 = vpack.c.b16 %v809, %v801
        %v938 = vpack.c.b16 %v810, %v802
        %v939 = vpack.c.b16 %v811, %v803
        %v940 = vpack.c.b16 %v812, %v804
        %v941 = vpack.c.b16 %v813, %v805
        %v942 = vpack.c.b16 %v814, %v806
        %v943 = vpack.c.b16 %v815, %v807
        %v944 = vpack.c.b16 %v816, %v808
        %1073 = vmatprep.subr.bf16.mxu0 %v818
        %1074 = vmatpush1.bf16.msra.mxu0 %v817
        %1075 = vmatprep.subr.bf16.mxu0 %v826
        %1076 = vmatpush1.bf16.msra.mxu0 %v825
        %1077 = vmatprep.subr.bf16.mxu0 %v834
        %1078 = vmatpush1.bf16.msra.mxu0 %v833
        %1079 = vmatprep.subr.bf16.mxu0 %v842
        %1080 = vmatpush1.bf16.msra.mxu0 %v841
        %1081 = vmatprep.subr.bf16.mxu0 %v850
        %1082 = vmatpush1.bf16.msra.mxu0 %v849
        %1083 = vmatprep.subr.bf16.mxu0 %v858
        %1084 = vmatpush1.bf16.msra.mxu0 %v857
        %1085 = vmatprep.subr.bf16.mxu0 %v866
        %1086 = vmatpush1.bf16.msra.mxu0 %v865
        %1087 = vmatprep.subr.bf16.mxu0 %v874
        %1088 = vmatpush1.bf16.msra.mxu0 %v873
        %1089 = vmatprep.subr.bf16.mxu0 %v882
        %1090 = vmatpush1.bf16.msra.mxu0 %v881
        %1091 = vmatprep.subr.bf16.mxu0 %v890
        %1092 = vmatpush1.bf16.msra.mxu0 %v889
        %1093 = vmatprep.subr.bf16.mxu0 %v898
        %1094 = vmatpush1.bf16.msra.mxu0 %v897
        %1095 = vmatprep.subr.bf16.mxu0 %v906
        %1096 = vmatpush1.bf16.msra.mxu0 %v905
        %1097 = vmatprep.subr.bf16.mxu0 %v914
        %1098 = vmatpush1.bf16.msra.mxu0 %v913
        %1099 = vmatprep.subr.bf16.mxu0 %v922
        %1100 = vmatpush1.bf16.msra.mxu0 %v921
        %1101 = vmatprep.subr.bf16.mxu0 %v930
        %1102 = vmatpush1.bf16.msra.mxu0 %v929
        %1103 = vmatprep.subr.bf16.mxu0 %v938
        %1104 = vmatpush1.bf16.msra.mxu0 %v937
        %1105 = vmatprep.mubr.bf16.mxu0 %v304
        %1106 = vmatmul.mubr.bf16.gmra.mrb[0].mxu0 %v303
        %v1107 = vpop.f32.mrb[0].mxu0
        %v1108 = vadd.f32 0.0, %v1107
        %v1109 = vpop.f32.mrb[0].mxu0
        %v1110 = vadd.f32 0.0, %v1109
        %v1111 = vpop.f32.mrb[0].mxu0
        %v1112 = vpop.f32.mrb[0].mxu0
        %1113 = vdwg.mxu0
        %1114 = vmatprep.subr.bf16.mxu0 %v820
        %1115 = vmatpush1.bf16.msra.mxu0 %v819
        %1116 = vmatprep.subr.bf16.mxu0 %v828
        %1117 = vmatpush1.bf16.msra.mxu0 %v827
        %1118 = vmatprep.subr.bf16.mxu0 %v836
        %1119 = vmatpush1.bf16.msra.mxu0 %v835
        %1120 = vmatprep.subr.bf16.mxu0 %v844
        %1121 = vmatpush1.bf16.msra.mxu0 %v843
        %1122 = vmatprep.subr.bf16.mxu0 %v852
        %1123 = vmatpush1.bf16.msra.mxu0 %v851
        %1124 = vmatprep.subr.bf16.mxu0 %v860
        %1125 = vmatpush1.bf16.msra.mxu0 %v859
        %1126 = vmatprep.subr.bf16.mxu0 %v868
        %1127 = vmatpush1.bf16.msra.mxu0 %v867
        %1128 = vmatprep.subr.bf16.mxu0 %v876
        %1129 = vmatpush1.bf16.msra.mxu0 %v875
        %1130 = vmatprep.subr.bf16.mxu0 %v884
        %1131 = vmatpush1.bf16.msra.mxu0 %v883
        %1132 = vmatprep.subr.bf16.mxu0 %v892
        %1133 = vmatpush1.bf16.msra.mxu0 %v891
        %1134 = vmatprep.subr.bf16.mxu0 %v900
        %1135 = vmatpush1.bf16.msra.mxu0 %v899
        %1136 = vmatprep.subr.bf16.mxu0 %v908
        %1137 = vmatpush1.bf16.msra.mxu0 %v907
        %1138 = vmatprep.subr.bf16.mxu0 %v916
        %1139 = vmatpush1.bf16.msra.mxu0 %v915
        %1140 = vmatprep.subr.bf16.mxu0 %v924
        %1141 = vmatpush1.bf16.msra.mxu0 %v923
        %1142 = vmatprep.subr.bf16.mxu0 %v932
        %1143 = vmatpush1.bf16.msra.mxu0 %v931
        %1144 = vmatprep.subr.bf16.mxu0 %v940
        %1145 = vmatpush1.bf16.msra.mxu0 %v939
        %1146 = vmatprep.mubr.bf16.mxu0 %v304
        %1147 = vmatmul.mubr.bf16.gmra.mrb[0].mxu0 %v303
        %v1148 = vpop.f32.mrb[0].mxu0
        %v1149 = vadd.f32 0.0, %v1148
        %v1150 = vpop.f32.mrb[0].mxu0
        %v1151 = vadd.f32 0.0, %v1150
        %v1152 = vpop.f32.mrb[0].mxu0
        %v1153 = vpop.f32.mrb[0].mxu0
        %1154 = vdwg.mxu0
        %1155 = vmatprep.subr.bf16.mxu0 %v822
        %1156 = vmatpush1.bf16.msra.mxu0 %v821
        %1157 = vmatprep.subr.bf16.mxu0 %v830
        %1158 = vmatpush1.bf16.msra.mxu0 %v829
        %1159 = vmatprep.subr.bf16.mxu0 %v838
        %1160 = vmatpush1.bf16.msra.mxu0 %v837
        %1161 = vmatprep.subr.bf16.mxu0 %v846
        %1162 = vmatpush1.bf16.msra.mxu0 %v845
        %1163 = vmatprep.subr.bf16.mxu0 %v854
        %1164 = vmatpush1.bf16.msra.mxu0 %v853
        %1165 = vmatprep.subr.bf16.mxu0 %v862
        %1166 = vmatpush1.bf16.msra.mxu0 %v861
        %1167 = vmatprep.subr.bf16.mxu0 %v870
        %1168 = vmatpush1.bf16.msra.mxu0 %v869
        %1169 = vmatprep.subr.bf16.mxu0 %v878
        %1170 = vmatpush1.bf16.msra.mxu0 %v877
        %1171 = vmatprep.subr.bf16.mxu0 %v886
        %1172 = vmatpush1.bf16.msra.mxu0 %v885
        %1173 = vmatprep.subr.bf16.mxu0 %v894
        %1174 = vmatpush1.bf16.msra.mxu0 %v893
        %1175 = vmatprep.subr.bf16.mxu0 %v902
        %1176 = vmatpush1.bf16.msra.mxu0 %v901
        %1177 = vmatprep.subr.bf16.mxu0 %v910
        %1178 = vmatpush1.bf16.msra.mxu0 %v909
        %1179 = vmatprep.subr.bf16.mxu0 %v918
        %1180 = vmatpush1.bf16.msra.mxu0 %v917
        %1181 = vmatprep.subr.bf16.mxu0 %v926
        %1182 = vmatpush1.bf16.msra.mxu0 %v925
        %1183 = vmatprep.subr.bf16.mxu0 %v934
        %1184 = vmatpush1.bf16.msra.mxu0 %v933
        %1185 = vmatprep.subr.bf16.mxu0 %v942
        %1186 = vmatpush1.bf16.msra.mxu0 %v941
        %1187 = vmatprep.mubr.bf16.mxu0 %v304
        %1188 = vmatmul.mubr.bf16.gmra.mrb[0].mxu0 %v303
        %v1189 = vpop.f32.mrb[0].mxu0
        %v1190 = vadd.f32 0.0, %v1189
        %v1191 = vpop.f32.mrb[0].mxu0
        %v1192 = vadd.f32 0.0, %v1191
        %v1193 = vpop.f32.mrb[0].mxu0
        %v1194 = vpop.f32.mrb[0].mxu0
        %1195 = vdwg.mxu0
        %1196 = vmatprep.subr.bf16.mxu0 %v824
        %1197 = vmatpush1.bf16.msra.mxu0 %v823
        %1198 = vmatprep.subr.bf16.mxu0 %v832
        %1199 = vmatpush1.bf16.msra.mxu0 %v831
        %1200 = vmatprep.subr.bf16.mxu0 %v840
        %1201 = vmatpush1.bf16.msra.mxu0 %v839
        %1202 = vmatprep.subr.bf16.mxu0 %v848
        %1203 = vmatpush1.bf16.msra.mxu0 %v847
        %1204 = vmatprep.subr.bf16.mxu0 %v856
        %1205 = vmatpush1.bf16.msra.mxu0 %v855
        %1206 = vmatprep.subr.bf16.mxu0 %v864
        %1207 = vmatpush1.bf16.msra.mxu0 %v863
        %1208 = vmatprep.subr.bf16.mxu0 %v872
        %1209 = vmatpush1.bf16.msra.mxu0 %v871
        %1210 = vmatprep.subr.bf16.mxu0 %v880
        %1211 = vmatpush1.bf16.msra.mxu0 %v879
        %1212 = vmatprep.subr.bf16.mxu0 %v888
        %1213 = vmatpush1.bf16.msra.mxu0 %v887
        %1214 = vmatprep.subr.bf16.mxu0 %v896
        %1215 = vmatpush1.bf16.msra.mxu0 %v895
        %1216 = vmatprep.subr.bf16.mxu0 %v904
        %1217 = vmatpush1.bf16.msra.mxu0 %v903
        %1218 = vmatprep.subr.bf16.mxu0 %v912
        %1219 = vmatpush1.bf16.msra.mxu0 %v911
        %1220 = vmatprep.subr.bf16.mxu0 %v920
        %1221 = vmatpush1.bf16.msra.mxu0 %v919
        %1222 = vmatprep.subr.bf16.mxu0 %v928
        %1223 = vmatpush1.bf16.msra.mxu0 %v927
        %1224 = vmatprep.subr.bf16.mxu0 %v936
        %1225 = vmatpush1.bf16.msra.mxu0 %v935
        %1226 = vmatprep.subr.bf16.mxu0 %v944
        %1227 = vmatpush1.bf16.msra.mxu0 %v943
        %1228 = vmatprep.mubr.bf16.mxu0 %v304
        %1229 = vmatmul.mubr.bf16.gmra.mrb[0].mxu0 %v303
        %v1230 = vpop.f32.mrb[0].mxu0
        %v1231 = vadd.f32 0.0, %v1230
        %v1232 = vpop.f32.mrb[0].mxu0
        %v1233 = vadd.f32 0.0, %v1232
        %v1234 = vpop.f32.mrb[0].mxu0
        %v1235 = vpop.f32.mrb[0].mxu0
        %1236 = vdwg.mxu0
        %1237 = vst [vmem:[%s205] sm:$0xff] %v1108
        %1238 = vst [vmem:[%s205 + $0x8] sm:$0xff] %v1110
        %1239 = vst [vmem:[%s205 + $0x10] sm:$0xff] %v1149
        %1240 = vst [vmem:[%s205 + $0x18] sm:$0xff] %v1151
        %1241 = vst [vmem:[%s205 + $0x20] sm:$0xff] %v1190
        %1242 = vst [vmem:[%s205 + $0x28] sm:$0xff] %v1192
        %1243 = vst [vmem:[%s205 + $0x30] sm:$0xff] %v1231
        %1244 = vst [vmem:[%s205 + $0x38] sm:$0xff] %v1233
        %s1245 = sand.u32 %s116, 1
        %s1246 = scalar_lea.sflag [#allocation4], %s1245
        %s1247 = sand.u32 %s116, 1
        %s1248 = smul.addr %s1247, 64
        %s1249 = scalar_lea.vmem [#allocation5], %s1248
        // Predicated region
        $region41: #{tpu_custom_call.1} parent=35 // pred_check
          %p1250 = pneg %p126
        $region42: #{tpu_custom_call.1} parent=35 // pred_check_branch
          %1252 = sbr.rel (%p1250) target = $region44
        $region43: #{tpu_custom_call.1} parent=35 // pred_region
          %s1254 = ssub.s32 1024, 1024
          %1255 = vsyncadd %s1246, %s1254
          %s1256 = smul.addr %s19, 8
          %s1257 = smul.addr %s1256, 128
          %s1258 = scalar_lea.hbm %s4, %s1257
          %s1260 = sshll.u32 %s1249, 4
          %s1261 = int_to_ptr.vmem [resolvable:$true] %s1260
          %1263 = dma.vmem_to_hbm [thread:$0]  %s1261, 1024, %s1258, %s1246
        $region44: #{tpu_custom_call.1} parent=35 // pred_fallthru
          _
      $region36: #{tpu_custom_call.1} parent=5 // pred_fallthru
        _
      %p1264 = scmp.le.s32.totalorder 2, %s14
      // Predicated region
      $region45: #{tpu_custom_call.1} parent=5 // pred_check
        %p1265 = pneg %p1264
      $region46: #{tpu_custom_call.1} parent=5 // pred_check_branch
        %1267 = sbr.rel (%p1265) target = $region48
      $region47: #{tpu_custom_call.1} parent=5 // pred_region
        %s1268 = ssub.s32 %s14, 2
        // Predicated region
        $region49: #{tpu_custom_call.1} parent=47 // pred_check
          %p1269 = pneg %p132
        $region50: #{tpu_custom_call.1} parent=47 // pred_check_branch
          %1271 = sbr.rel (%p1269) target = $region52
        $region51: #{tpu_custom_call.1} parent=47 // pred_region
          %s1272 = sand.u32 %s117, 1
          %s1273 = scalar_lea.sflag [#allocation4], %s1272
          %s1274 = sand.u32 %s117, 1
          %s1275 = smul.addr %s1274, 64
          %s1276 = scalar_lea.vmem [#allocation5], %s1275
          %1277 = dma.done %s1273, 1024
        $region52: #{tpu_custom_call.1} parent=47 // pred_fallthru
          _
      $region48: #{tpu_custom_call.1} parent=5 // pred_fallthru
        _
    $region6: #{tpu_custom_call.1} parent=1 // loop_footer
      %s18 = sadd.s32 1, %s14
    $region7: #{tpu_custom_call.1} parent=1 // loop_footer_branch
      %13 = sbr.rel target = $region3
    $region8: #{tpu_custom_call.1} parent=1 // loop_exit
      _
    %1278 = vsyncpa [#allocation3], 1
    %s1279 = scalar_lea.sflag [#allocation3], 1
    %1280 = vsyncpa %s1279, 1
    %1281 = vsyncpa [#allocation4], 1
    %s1282 = scalar_lea.sflag [#allocation4], 1
    %1283 = vsyncpa %s1282, 1

</llo_original>
